<compile_context>
chip_gen: v6e
topology: v6e:2x2x1
jax: 0.10.0
libtpu: 0.0.40
codegen_flags: <defaults>
</compile_context>

<pallas_src>
import numpy as np
import jax
import jax.numpy as jnp
from jax.experimental import pallas as pl
from jax.experimental.pallas import tpu as pltpu

_LANE = 128


def _round_up(x, m):
    return (x + m - 1) // m * m


def _cdiv(a, b):
    return (a + b - 1) // b


def _vmem_cap_bytes():
    """Usable VMEM cap (85% of physical); conservative fallback below v7x's 64 MiB."""
    try:
        return int(pltpu.get_tpu_info().vmem_capacity_bytes * 0.85)
    except Exception:
        return 48 * 1024 * 1024


def _maybe_buffered_spec(shape, index_map, buffers):
    """BlockSpec with an optional pipeline buffer count (fallback if unsupported)."""
    if buffers is None:
        return pl.BlockSpec(shape, index_map)
    try:
        return pl.BlockSpec(shape, index_map, pipeline_mode=pl.Buffered(buffers))
    except Exception:
        return pl.BlockSpec(shape, index_map)


def _mlp_kernel(x_ref, w1_ref, b1_ref, w2_ref, b2_ref, o_ref, acc_ref):
    """out = relu(x @ w1 + b1) @ w2 + b2, accumulated over hidden-dim chunks."""
    k = pl.program_id(1)

    @pl.when(k == 0)
    def _():
        acc_ref[...] = jnp.zeros_like(acc_ref)

    # MXU matmuls with f32 accumulation; bias-add + ReLU in f32 on the VPU
    # (keeps v5e happy -- its VPU has no bf16).
    h = jnp.dot(x_ref[...], w1_ref[...], preferred_element_type=jnp.float32)
    h = jnp.maximum(h + b1_ref[...], 0.0)
    h = h.astype(w2_ref.dtype)  # back to MXU input dtype (bf16 or f32)
    acc_ref[...] += jnp.dot(h, w2_ref[...], preferred_element_type=jnp.float32)

    @pl.when(k == pl.num_programs(1) - 1)
    def _():
        o_ref[...] = (acc_ref[...] + b2_ref[...]).astype(o_ref.dtype)


def prepare_params(w1, b1, w2, b2, *, compute_dtype=jnp.bfloat16,
                   lane_multiple=_LANE):
    """One-time weight prep (pad + cast), hoisted out of the per-call path.

    Feature dims smaller than `lane_multiple` are left unpadded (full-dim
    blocks are legal; padding tiny dims only inflates FLOPs/DMA).  Larger dims
    are rounded up so the MXU sees full tiles and output stores are unmasked.
    compute_dtype=bf16 halves weight DMA/VMEM and ~doubles MXU rate on
    v6e/v7x; pass jnp.float32 for a bit-tight path.
    """
    # TODO(synk): auto-select lane_multiple=256 on v6e/v7x (2x256^2 MXU) via a
    # chip-version query once that attribute is stable.
    compute_dtype = jnp.dtype(compute_dtype)
    D, H = w1.shape
    C = w2.shape[1]
    b1 = jnp.reshape(b1, (1, H))
    b2 = jnp.reshape(b2, (1, C))

    def padded(d):
        return _round_up(d, lane_multiple) if d >= lane_multiple else d

    Dp, Hp, Cp = padded(D), padded(H), padded(C)
    w1p = jnp.pad(w1, ((0, Dp - D), (0, Hp - H))).astype(compute_dtype)
    b1p = jnp.pad(b1, ((0, 0), (0, Hp - H))).astype(jnp.float32)
    w2p = jnp.pad(w2, ((0, Hp - H), (0, Cp - C))).astype(compute_dtype)
    b2p = jnp.pad(b2, ((0, 0), (0, Cp - C))).astype(jnp.float32)
    return dict(w1p=w1p, b1p=b1p, w2p=w2p, b2p=b2p,
                d_in=D, hidden=H, classes=C,
                compute_dtype=compute_dtype, lane_multiple=lane_multiple)


def simple_network_forward(x, params, *, block_batch=512, out_dtype=None):
    """x: (B, D_in); params: output of prepare_params. Returns (B, num_classes)."""
    B, D = x.shape
    assert D == params["d_in"], "input feature size mismatch"
    w1p, b1p, w2p, b2p = params["w1p"], params["b1p"], params["w2p"], params["b2p"]
    comp = params["compute_dtype"]
    lane = params["lane_multiple"]
    Dp, Hp = w1p.shape
    Cp = w2p.shape[1]
    C = params["classes"]
    out_dtype = jnp.dtype(x.dtype if out_dtype is None else out_dtype)
    comp_isz = comp.itemsize
    out_isz = out_dtype.itemsize

    # Sublane minimum: sub-32-bit dtypes pack 16 rows per vreg, f32 packs 8.
    min_sub = 8 if (comp_isz == 4 and out_isz == 4) else 16

    # --- batch tiling: aim for >=2 grid steps (pipelining + v7x megacore) ---
    Bp0 = _round_up(B, min_sub)
    TB = min(block_batch, Bp0)
    if Bp0 > min_sub and Bp0 <= TB:
        TB = _round_up(_cdiv(Bp0, 2), min_sub)
    TB = max(min_sub, _round_up(TB, min_sub))
    Bp = _round_up(B, TB)
    nb = Bp // TB

    # --- hidden-dim (K) tiling: only when resident weights threaten VMEM ---
    cap = _vmem_cap_bytes()
    TH = Hp
    if Hp % lane == 0:
        while (TH > lane
               and (Dp * TH + TH * Cp) * comp_isz > cap // 2
               and TH % (2 * lane) == 0):
            TH //= 2
    nh = Hp // TH

    # VMEM budget: single-buffered resident weights, double-buffered streamed
    # x/out tiles, accumulator + hidden working set, plus headroom.
    w_bufs = 1 if nh == 1 else 2
    need = (2 * TB * Dp * comp_isz + 2 * TB * Cp * out_isz
            + w_bufs * (Dp * TH + TH * Cp) * comp_isz
            + w_bufs * 8 * (TH + Cp) * 4
            + TB * Cp * 4 + 2 * TB * TH * 4)
    vmem_limit = min(max(int(need * 1.5) + (16 << 20), 32 << 20), cap)

    # Pad x: batch to a TB multiple, features to Dp.  NOTE: padded batch rows
    # produce non-zero garbage (relu(b1) @ w2 + b2) that is removed only by
    # the trailing [:B, :C] slice -- do not drop the slice or alias the padded
    # output buffer.
    xp = jnp.pad(x, ((0, Bp - B), (0, Dp - D))).astype(comp)

    cost = pl.CostEstimate(
        flops=2 * Bp * (Dp * Hp + Hp * Cp),
        transcendentals=0,
        bytes_accessed=(xp.size * comp_isz
                        + (w1p.size + w2p.size) * comp_isz
                        + (b1p.size + b2p.size) * 4
                        + Bp * Cp * out_isz),
    )

    def _call(weight_buffers):
        in_specs = [
            pl.BlockSpec((TB, Dp), lambda i, k: (i, 0)),                      # x
            _maybe_buffered_spec((Dp, TH), lambda i, k: (0, k), weight_buffers),  # w1
            _maybe_buffered_spec((1, TH), lambda i, k: (0, k), weight_buffers),   # b1
            _maybe_buffered_spec((TH, Cp), lambda i, k: (k, 0), weight_buffers),  # w2
            _maybe_buffered_spec((1, Cp), lambda i, k: (0, 0), weight_buffers),   # b2
        ]
        return pl.pallas_call(
            _mlp_kernel,
            out_shape=jax.ShapeDtypeStruct((Bp, Cp), out_dtype),
            grid_spec=pltpu.PrefetchScalarGridSpec(
                num_scalar_prefetch=0,
                grid=(nb, nh),
                in_specs=in_specs,
                out_specs=pl.BlockSpec((TB, Cp), lambda i, k: (i, 0)),
                scratch_shapes=[pltpu.VMEM((TB, Cp), jnp.float32)],
            ),
            compiler_params=pltpu.CompilerParams(
                dimension_semantics=("parallel", "arbitrary"),
                vmem_limit_bytes=vmem_limit,
            ),
            cost_estimate=cost,
        )(xp, w1p, b1p, w2p, b2p)

    if nh == 1:
        # Weights are resident across the whole grid -> one pipeline buffer.
        try:
            out = _call(1)
        except Exception:
            out = _call(None)  # fall back to library-default double buffering
    else:
        out = _call(None)      # weight blocks vary over k -> default pipelining

    return out[:B, :C]


def init_params(key, input_size, hidden_size, num_classes, dtype=jnp.float32):
    """Deterministic synthetic init (uniform, roughly PyTorch Linear scale)."""
    k1, k2, k3, k4 = jax.random.split(key, 4)
    s1 = 1.0 / np.sqrt(input_size)
    s2 = 1.0 / np.sqrt(hidden_size)
    w1 = jax.random.uniform(k1, (input_size, hidden_size), dtype, -s1, s1)
    b1 = jax.random.uniform(k2, (1, hidden_size), dtype, -s1, s1)
    w2 = jax.random.uniform(k3, (hidden_size, num_classes), dtype, -s2, s2)
    b2 = jax.random.uniform(k4, (1, num_classes), dtype, -s2, s2)
    return w1, b1, w2, b2


def reference_forward(x, w1, b1, w2, b2):
    h = jnp.maximum(x @ w1 + b1, 0.0)
    return h @ w2 + b2


if __name__ == "__main__":
    batch, input_size, hidden_size, num_classes = 8, 32, 64, 16

    key = jax.random.PRNGKey(0)
    kx, kp = jax.random.split(key)
    x = jax.random.normal(kx, (batch, input_size), jnp.float32)
    w1, b1, w2, b2 = init_params(kp, input_size, hidden_size, num_classes)

    ref = reference_forward(x, w1, b1, w2, b2)

    # f32 MXU path: matches reference tightly.
    params_f32 = prepare_params(w1, b1, w2, b2, compute_dtype=jnp.float32)
    out = simple_network_forward(x, params_f32)
    jax.block_until_ready(out)
    assert out.shape == (batch, num_classes)
    assert jnp.allclose(out, ref, atol=1e-5, rtol=1e-5)

    # bf16 MXU path (default prep, recommended on v6e/v7x): f32 accumulation,
    # looser tolerance.
    params_bf16 = prepare_params(w1, b1, w2, b2)
    out_bf16 = simple_network_forward(x, params_bf16)
    jax.block_until_ready(out_bf16)
    assert out_bf16.shape == (batch, num_classes)
    assert jnp.allclose(out_bf16, ref, atol=5e-2, rtol=5e-2)

    print("KERNEL_OK")
</pallas_src>

<mosaic_0001>
module attributes {stable_mosaic.version = 11 : i64} {
  func.func @_mlp_kernel(%arg0: i32, %arg1: i32, %arg2: memref<8x32xf32, #tpu.memory_space<vmem>>, %arg3: memref<32x64xf32, #tpu.memory_space<vmem>>, %arg4: memref<1x64xf32, #tpu.memory_space<vmem>>, %arg5: memref<64x16xf32, #tpu.memory_space<vmem>>, %arg6: memref<1x16xf32, #tpu.memory_space<vmem>>, %arg7: memref<8x16xf32, #tpu.memory_space<vmem>>, %arg8: memref<8x16xf32, #tpu.memory_space<vmem>>) attributes {dimension_semantics = [#tpu.dimension_semantics<parallel>, #tpu.dimension_semantics<arbitrary>], iteration_bounds = array<i64: 1, 1>, scalar_prefetch = 0 : i64, scratch_operands = 1 : i64, tpu.core_type = #tpu.core_type<tc>, window_params = [{transform_indices = @transform_0, window_bounds = array<i64: 8, 32>}, {pipeline_mode = #tpu.pipeline_mode<synchronous>, transform_indices = @transform_1, window_bounds = array<i64: 32, 64>}, {pipeline_mode = #tpu.pipeline_mode<synchronous>, transform_indices = @transform_2, window_bounds = array<i64: 1, 64>}, {pipeline_mode = #tpu.pipeline_mode<synchronous>, transform_indices = @transform_3, window_bounds = array<i64: 64, 16>}, {pipeline_mode = #tpu.pipeline_mode<synchronous>, transform_indices = @transform_4, window_bounds = array<i64: 1, 16>}, {transform_indices = @transform_5, window_bounds = array<i64: 8, 16>}]} {
    %c0_i32 = arith.constant 0 : i32
    %0 = arith.cmpi eq, %arg1, %c0_i32 : i32
    %1 = arith.extui %0 : i1 to i32
    %c0_i32_0 = arith.constant 0 : i32
    %2 = arith.cmpi ne, %1, %c0_i32_0 : i32
    scf.if %2 {
      %cst_16 = arith.constant 0.000000e+00 : f32
      %19 = vector.broadcast %cst_16 : f32 to vector<8x16xf32>
      %c0_17 = arith.constant 0 : index
      %c0_18 = arith.constant 0 : index
      %20 = vector.load %arg8[%c0_17, %c0_18] : memref<8x16xf32, #tpu.memory_space<vmem>>, vector<8x16xf32>
      tpu.vector_store %arg8[%c0_17, %c0_18], %19 {strides = array<i32>} : memref<8x16xf32, #tpu.memory_space<vmem>>, vector<8x16xf32>,
    } else {
    }
    %c0 = arith.constant 0 : index
    %c0_1 = arith.constant 0 : index
    %3 = vector.load %arg2[%c0, %c0_1] : memref<8x32xf32, #tpu.memory_space<vmem>>, vector<8x32xf32>
    %c0_2 = arith.constant 0 : index
    %c0_3 = arith.constant 0 : index
    %4 = vector.load %arg3[%c0_2, %c0_3] : memref<32x64xf32, #tpu.memory_space<vmem>>, vector<32x64xf32>
    %cst = arith.constant dense<0.000000e+00> : vector<8x64xf32>
    %5 = tpu.matmul %3, %4, %cst {dimension_numbers = #tpu.dot_dimension_numbers<[1], [0], [0], [1], [0, 0, 1, 1], [], []>} : vector<8x32xf32>, vector<32x64xf32>, vector<8x64xf32> -> vector<8x64xf32>
    %c0_4 = arith.constant 0 : index
    %c0_5 = arith.constant 0 : index
    %6 = vector.load %arg4[%c0_4, %c0_5] : memref<1x64xf32, #tpu.memory_space<vmem>>, vector<1x64xf32>
    %7 = vector.broadcast %6 : vector<1x64xf32> to vector<8x64xf32>
    %8 = arith.addf %5, %7 : vector<8x64xf32>
    %cst_6 = arith.constant 0.000000e+00 : f32
    %9 = vector.broadcast %cst_6 : f32 to vector<8x64xf32>
    %10 = arith.maximumf %8, %9 : vector<8x64xf32>
    %c0_7 = arith.constant 0 : index
    %c0_8 = arith.constant 0 : index
    %11 = vector.load %arg8[%c0_7, %c0_8] : memref<8x16xf32, #tpu.memory_space<vmem>>, vector<8x16xf32>
    %c0_9 = arith.constant 0 : index
    %c0_10 = arith.constant 0 : index
    %12 = vector.load %arg5[%c0_9, %c0_10] : memref<64x16xf32, #tpu.memory_space<vmem>>, vector<64x16xf32>
    %cst_11 = arith.constant dense<0.000000e+00> : vector<8x16xf32>
    %13 = tpu.matmul %10, %12, %cst_11 {dimension_numbers = #tpu.dot_dimension_numbers<[1], [0], [0], [1], [0, 0, 1, 1], [], []>} : vector<8x64xf32>, vector<64x16xf32>, vector<8x16xf32> -> vector<8x16xf32>
    %14 = arith.addf %11, %13 : vector<8x16xf32>
    %c0_12 = arith.constant 0 : index
    %c0_13 = arith.constant 0 : index
    %15 = vector.load %arg8[%c0_12, %c0_13] : memref<8x16xf32, #tpu.memory_space<vmem>>, vector<8x16xf32>
    tpu.vector_store %arg8[%c0_12, %c0_13], %14 {strides = array<i32>} : memref<8x16xf32, #tpu.memory_space<vmem>>, vector<8x16xf32>,
    %c0_i32_14 = arith.constant 0 : i32
    %16 = arith.cmpi eq, %arg1, %c0_i32_14 : i32
    %17 = arith.extui %16 : i1 to i32
    %c0_i32_15 = arith.constant 0 : i32
    %18 = arith.cmpi ne, %17, %c0_i32_15 : i32
    scf.if %18 {
      %c0_16 = arith.constant 0 : index
      %c0_17 = arith.constant 0 : index
      %19 = vector.load %arg8[%c0_16, %c0_17] : memref<8x16xf32, #tpu.memory_space<vmem>>, vector<8x16xf32>
      %c0_18 = arith.constant 0 : index
      %c0_19 = arith.constant 0 : index
      %20 = vector.load %arg6[%c0_18, %c0_19] : memref<1x16xf32, #tpu.memory_space<vmem>>, vector<1x16xf32>
      %21 = vector.broadcast %20 : vector<1x16xf32> to vector<8x16xf32>
      %22 = arith.addf %19, %21 : vector<8x16xf32>
      %c0_20 = arith.constant 0 : index
      %c0_21 = arith.constant 0 : index
      %23 = vector.load %arg7[%c0_20, %c0_21] : memref<8x16xf32, #tpu.memory_space<vmem>>, vector<8x16xf32>
      tpu.vector_store %arg7[%c0_20, %c0_21], %22 {strides = array<i32>} : memref<8x16xf32, #tpu.memory_space<vmem>>, vector<8x16xf32>,
    } else {
    }
    return
  }
  func.func @transform_0(%arg0: i32, %arg1: i32) -> (i32, i32) {
    %c0_i32 = arith.constant 0 : i32
    %c0_i32_0 = arith.constant 0 : i32
    return %arg0, %c0_i32 : i32, i32
  }
  func.func @transform_1(%arg0: i32, %arg1: i32) -> (i32, i32) {
    %c0_i32 = arith.constant 0 : i32
    %c0_i32_0 = arith.constant 0 : i32
    return %c0_i32, %arg1 : i32, i32
  }
  func.func @transform_2(%arg0: i32, %arg1: i32) -> (i32, i32) {
    %c0_i32 = arith.constant 0 : i32
    %c0_i32_0 = arith.constant 0 : i32
    return %c0_i32, %arg1 : i32, i32
  }
  func.func @transform_3(%arg0: i32, %arg1: i32) -> (i32, i32) {
    %c0_i32 = arith.constant 0 : i32
    %c0_i32_0 = arith.constant 0 : i32
    return %arg1, %c0_i32 : i32, i32
  }
  func.func @transform_4(%arg0: i32, %arg1: i32) -> (i32, i32) {
    %c0_i32 = arith.constant 0 : i32
    %c0_i32_0 = arith.constant 0 : i32
    %c0_i32_1 = arith.constant 0 : i32
    return %c0_i32, %c0_i32_0 : i32, i32
  }
  func.func @transform_5(%arg0: i32, %arg1: i32) -> (i32, i32) {
    %c0_i32 = arith.constant 0 : i32
    %c0_i32_0 = arith.constant 0 : i32
    return %arg0, %c0_i32 : i32, i32
  }
}

module attributes {stable_mosaic.version = 11 : i64} {
  func.func @_mlp_kernel(%arg0: i32, %arg1: i32, %arg2: memref<8x32xf32, #tpu.memory_space<vmem>>, %arg3: memref<32x64xf32, #tpu.memory_space<vmem>>, %arg4: memref<1x64xf32, #tpu.memory_space<vmem>>, %arg5: memref<64x16xf32, #tpu.memory_space<vmem>>, %arg6: memref<1x16xf32, #tpu.memory_space<vmem>>, %arg7: memref<8x16xf32, #tpu.memory_space<vmem>>, %arg8: memref<8x16xf32, #tpu.memory_space<vmem>>) attributes {dimension_semantics = [#tpu.dimension_semantics<parallel>, #tpu.dimension_semantics<arbitrary>], iteration_bounds = array<i64: 1, 1>, scalar_prefetch = 0 : i64, scratch_operands = 1 : i64, tpu.core_type = #tpu.core_type<tc>, window_params = [{transform_indices = @transform_0, window_bounds = array<i64: 8, 32>}, {transform_indices = @transform_1, window_bounds = array<i64: 32, 64>}, {transform_indices = @transform_2, window_bounds = array<i64: 1, 64>}, {transform_indices = @transform_3, window_bounds = array<i64: 64, 16>}, {pipeline_mode = #tpu.pipeline_mode<synchronous>, transform_indices = @transform_4, window_bounds = array<i64: 1, 16>}, {transform_indices = @transform_5, window_bounds = array<i64: 8, 16>}]} {
    %c0_i32 = arith.constant 0 : i32
    %0 = arith.cmpi eq, %arg1, %c0_i32 : i32
    %1 = arith.extui %0 : i1 to i32
    %c0_i32_0 = arith.constant 0 : i32
    %2 = arith.cmpi ne, %1, %c0_i32_0 : i32
    scf.if %2 {
      %cst_16 = arith.constant 0.000000e+00 : f32
      %19 = vector.broadcast %cst_16 : f32 to vector<8x16xf32>
      %c0_17 = arith.constant 0 : index
      %c0_18 = arith.constant 0 : index
      %20 = vector.load %arg8[%c0_17, %c0_18] : memref<8x16xf32, #tpu.memory_space<vmem>>, vector<8x16xf32>
      tpu.vector_store %arg8[%c0_17, %c0_18], %19 {strides = array<i32>} : memref<8x16xf32, #tpu.memory_space<vmem>>, vector<8x16xf32>,
    } else {
    }
    %c0 = arith.constant 0 : index
    %c0_1 = arith.constant 0 : index
    %3 = vector.load %arg2[%c0, %c0_1] : memref<8x32xf32, #tpu.memory_space<vmem>>, vector<8x32xf32>
    %c0_2 = arith.constant 0 : index
    %c0_3 = arith.constant 0 : index
    %4 = vector.load %arg3[%c0_2, %c0_3] : memref<32x64xf32, #tpu.memory_space<vmem>>, vector<32x64xf32>
    %cst = arith.constant dense<0.000000e+00> : vector<8x64xf32>
    %5 = tpu.matmul %3, %4, %cst {dimension_numbers = #tpu.dot_dimension_numbers<[1], [0], [0], [1], [0, 0, 1, 1], [], []>} : vector<8x32xf32>, vector<32x64xf32>, vector<8x64xf32> -> vector<8x64xf32>
    %c0_4 = arith.constant 0 : index
    %c0_5 = arith.constant 0 : index
    %6 = vector.load %arg4[%c0_4, %c0_5] : memref<1x64xf32, #tpu.memory_space<vmem>>, vector<1x64xf32>
    %7 = vector.broadcast %6 : vector<1x64xf32> to vector<8x64xf32>
    %8 = arith.addf %5, %7 : vector<8x64xf32>
    %cst_6 = arith.constant 0.000000e+00 : f32
    %9 = vector.broadcast %cst_6 : f32 to vector<8x64xf32>
    %10 = arith.maximumf %8, %9 : vector<8x64xf32>
    %c0_7 = arith.constant 0 : index
    %c0_8 = arith.constant 0 : index
    %11 = vector.load %arg8[%c0_7, %c0_8] : memref<8x16xf32, #tpu.memory_space<vmem>>, vector<8x16xf32>
    %c0_9 = arith.constant 0 : index
    %c0_10 = arith.constant 0 : index
    %12 = vector.load %arg5[%c0_9, %c0_10] : memref<64x16xf32, #tpu.memory_space<vmem>>, vector<64x16xf32>
    %cst_11 = arith.constant dense<0.000000e+00> : vector<8x16xf32>
    %13 = tpu.matmul %10, %12, %cst_11 {dimension_numbers = #tpu.dot_dimension_numbers<[1], [0], [0], [1], [0, 0, 1, 1], [], []>} : vector<8x64xf32>, vector<64x16xf32>, vector<8x16xf32> -> vector<8x16xf32>
    %14 = arith.addf %11, %13 : vector<8x16xf32>
    %c0_12 = arith.constant 0 : index
    %c0_13 = arith.constant 0 : index
    %15 = vector.load %arg8[%c0_12, %c0_13] : memref<8x16xf32, #tpu.memory_space<vmem>>, vector<8x16xf32>
    tpu.vector_store %arg8[%c0_12, %c0_13], %14 {strides = array<i32>} : memref<8x16xf32, #tpu.memory_space<vmem>>, vector<8x16xf32>,
    %c0_i32_14 = arith.constant 0 : i32
    %16 = arith.cmpi eq, %arg1, %c0_i32_14 : i32
    %17 = arith.extui %16 : i1 to i32
    %c0_i32_15 = arith.constant 0 : i32
    %18 = arith.cmpi ne, %17, %c0_i32_15 : i32
    scf.if %18 {
      %c0_16 = arith.constant 0 : index
      %c0_17 = arith.constant 0 : index
      %19 = vector.load %arg8[%c0_16, %c0_17] : memref<8x16xf32, #tpu.memory_space<vmem>>, vector<8x16xf32>
      %c0_18 = arith.constant 0 : index
      %c0_19 = arith.constant 0 : index
      %20 = vector.load %arg6[%c0_18, %c0_19] : memref<1x16xf32, #tpu.memory_space<vmem>>, vector<1x16xf32>
      %21 = vector.broadcast %20 : vector<1x16xf32> to vector<8x16xf32>
      %22 = arith.addf %19, %21 : vector<8x16xf32>
      %c0_20 = arith.constant 0 : index
      %c0_21 = arith.constant 0 : index
      %23 = vector.load %arg7[%c0_20, %c0_21] : memref<8x16xf32, #tpu.memory_space<vmem>>, vector<8x16xf32>
      tpu.vector_store %arg7[%c0_20, %c0_21], %22 {strides = array<i32>} : memref<8x16xf32, #tpu.memory_space<vmem>>, vector<8x16xf32>,
    } else {
    }
    return
  }
  func.func @transform_0(%arg0: i32, %arg1: i32) -> (i32, i32) {
    %c0_i32 = arith.constant 0 : i32
    %c0_i32_0 = arith.constant 0 : i32
    return %arg0, %c0_i32 : i32, i32
  }
  func.func @transform_1(%arg0: i32, %arg1: i32) -> (i32, i32) {
    %c0_i32 = arith.constant 0 : i32
    %c0_i32_0 = arith.constant 0 : i32
    return %c0_i32, %arg1 : i32, i32
  }
  func.func @transform_2(%arg0: i32, %arg1: i32) -> (i32, i32) {
    %c0_i32 = arith.constant 0 : i32
    %c0_i32_0 = arith.constant 0 : i32
    return %c0_i32, %arg1 : i32, i32
  }
  func.func @transform_3(%arg0: i32, %arg1: i32) -> (i32, i32) {
    %c0_i32 = arith.constant 0 : i32
    %c0_i32_0 = arith.constant 0 : i32
    return %arg1, %c0_i32 : i32, i32
  }
  func.func @transform_4(%arg0: i32, %arg1: i32) -> (i32, i32) {
    %c0_i32 = arith.constant 0 : i32
    %c0_i32_0 = arith.constant 0 : i32
    %c0_i32_1 = arith.constant 0 : i32
    return %c0_i32, %c0_i32_0 : i32, i32
  }
  func.func @transform_5(%arg0: i32, %arg1: i32) -> (i32, i32) {
    %c0_i32 = arith.constant 0 : i32
    %c0_i32_0 = arith.constant 0 : i32
    return %arg0, %c0_i32 : i32, i32
  }
}

</mosaic_0001>

<llo_original>
// kernel: tpu_custom_call.1
$region0: #{tpu_custom_call.1}
  #allocation0 [shape = 'u32[]', space=smem, size = 0x4, offset = 0x4, fixed_abs, tag = 'smem constant byte address 0x4 - core index']
  #allocation1 [shape = 'u32[144,128]{1,0:T(1,128)}', space=vmem, size = 0x12000, scoped, tag = 'internal scratch']
  #allocation2 [shape = 'f32[8,16]{1,0:T(8,128)}', space=vmem, size = 0x1000, scoped, tag = 'scratch operand']
  %s0 = inlined_call_operand.vmem [shape: f32[8,32], index: 0, kind: input, shape index: {}]
  %s1 = inlined_call_operand.vmem [shape: f32[32,64], index: 1, kind: input, shape index: {}]
  %s2 = inlined_call_operand.vmem [shape: f32[1,64], index: 2, kind: input, shape index: {}]
  %s3 = inlined_call_operand.vmem [shape: f32[64,16], index: 3, kind: input, shape index: {}]
  %s4 = inlined_call_operand.vmem [shape: f32[1,16], index: 4, kind: input, shape index: {}]
  %s5 = inlined_call_operand.hbm [shape: f32[8,16], index: 5, kind: output, shape index: {}]
  %s6 = sld [smem:[#allocation0]]
  $region38: #{tpu_custom_call.1} parent=0
    _
  %s8 = ssub.s32 1, %s6
  %s9 = scalar_select 0, %s8, %s6
  $region1: #{tpu_custom_call.1} parent=0
    #allocation3 [shape = 'u8[4096]{0}', space=vmem, size = 0x1000, scoped, tag = 'output window, operand 0, single buffered']
    #allocation4 [shape = 's32[1]{0}', space=sflag, size = 0x4, scoped, tag = 'scoped memory for tpu_custom_call.1']
    %10 = vsyncpa [#allocation4], 0
    // Predicated region
    $region2: #{tpu_custom_call.1} parent=1 // pred_check
      _
    $region3: #{tpu_custom_call.1} parent=1 // pred_check_branch
      %12 = sbr.rel (0) target = $region5
    $region4: #{tpu_custom_call.1} parent=1 // pred_region
      _
    $region5: #{tpu_custom_call.1} parent=1 // pred_fallthru
      _
    // Predicated region
    $region6: #{tpu_custom_call.1} parent=1 // pred_check
      _
    $region7: #{tpu_custom_call.1} parent=1 // pred_check_branch
      %14 = sbr.rel (0) target = $region9
    $region8: #{tpu_custom_call.1} parent=1 // pred_region
      _
    $region9: #{tpu_custom_call.1} parent=1 // pred_fallthru
      _
    // Predicated region
    $region10: #{tpu_custom_call.1} parent=1 // pred_check
      _
    $region11: #{tpu_custom_call.1} parent=1 // pred_check_branch
      %16 = sbr.rel (0) target = $region13
    $region12: #{tpu_custom_call.1} parent=1 // pred_region
      _
    $region13: #{tpu_custom_call.1} parent=1 // pred_fallthru
      _
    // Predicated region
    $region14: #{tpu_custom_call.1} parent=1 // pred_check
      _
    $region15: #{tpu_custom_call.1} parent=1 // pred_check_branch
      %18 = sbr.rel (0) target = $region17
    $region16: #{tpu_custom_call.1} parent=1 // pred_region
      _
    $region17: #{tpu_custom_call.1} parent=1 // pred_fallthru
      _
    // Predicated region
    $region18: #{tpu_custom_call.1} parent=1 // pred_check
      _
    $region19: #{tpu_custom_call.1} parent=1 // pred_check_branch
      %20 = sbr.rel (0) target = $region21
    $region20: #{tpu_custom_call.1} parent=1 // pred_region
      _
    $region21: #{tpu_custom_call.1} parent=1 // pred_fallthru
      _
    %p21 = scmp.eq.s32.totalorder 0, 0
    // Predicated region
    $region22: #{tpu_custom_call.1} parent=1 // pred_check
      %p22 = pneg %p21
    $region23: #{tpu_custom_call.1} parent=1 // pred_check_branch
      %24 = sbr.rel (%p22) target = $region25
    $region24: #{tpu_custom_call.1} parent=1 // pred_region
      %vm25 = vcmask 130048
      %26 = vst.msk [vmem:[#allocation2] sm:$0xff] %vm25, 0.0
    $region25: #{tpu_custom_call.1} parent=1 // pred_fallthru
      _
    %v27 = vld [vmem:[%s0] sm:$0xff]
    %v28 = vld [vmem:[%s1] sm:$0xff]
    %v29 = vld [vmem:[%s1 + $0x8] sm:$0xff]
    %v30 = vld [vmem:[%s1 + $0x10] sm:$0xff]
    %v31 = vld [vmem:[%s1 + $0x18] sm:$0xff]
    %v32 = vld [vmem:[%s2] sm:$0x1]
    %v34 = vlaneseq
    %v35 = vshrl.u32 %v34, 7
    %v36 = vsub.s32 0, %v35
    %v37 = vrot.slane %v32, %v36
    %vm39 = vcmask 261120
    %v41 = vsel %vm39, %v27, 0
    %43 = vmatprep.subr.mxu0 0.0
    %44 = vmatpush1.msra.mxu0 0.0
    %45 = vmatprep.subr.mxu0 0.0
    %46 = vmatpush1.msra.mxu0 0.0
    %47 = vmatprep.subr.mxu0 0.0
    %48 = vmatpush1.msra.mxu0 0.0
    %49 = vmatprep.subr.mxu0 0.0
    %50 = vmatpush1.msra.mxu0 0.0
    %51 = vmatprep.subr.mxu0 0.0
    %52 = vmatpush1.msra.mxu0 0.0
    %53 = vmatprep.subr.mxu0 0.0
    %54 = vmatpush1.msra.mxu0 0.0
    %55 = vmatprep.subr.mxu0 0.0
    %56 = vmatpush1.msra.mxu0 0.0
    %57 = vmatprep.subr.mxu0 0.0
    %58 = vmatpush1.msra.mxu0 0.0
    %59 = vmatprep.subr.mxu0 0.0
    %60 = vmatpush1.msra.mxu0 0.0
    %61 = vmatprep.subr.mxu0 0.0
    %62 = vmatpush1.msra.mxu0 0.0
    %63 = vmatprep.subr.mxu0 0.0
    %64 = vmatpush1.msra.mxu0 0.0
    %65 = vmatprep.subr.mxu0 0.0
    %66 = vmatpush1.msra.mxu0 0.0
    %67 = vmatprep.subr.mxu0 0.0
    %68 = vmatpush1.msra.mxu0 %v31
    %69 = vmatprep.subr.mxu0 0.0
    %70 = vmatpush1.msra.mxu0 %v30
    %71 = vmatprep.subr.mxu0 0.0
    %72 = vmatpush1.msra.mxu0 %v29
    %73 = vmatprep.subr.mxu0 0.0
    %74 = vmatpush1.msra.mxu0 %v28
    %75 = vmatprep.subr.mxu0 0.0
    %76 = vmatpush2.msra.mxu0 0.0
    %77 = vmatprep.subr.mxu0 0.0
    %78 = vmatpush2.msra.mxu0 0.0
    %79 = vmatprep.subr.mxu0 0.0
    %80 = vmatpush2.msra.mxu0 0.0
    %81 = vmatprep.subr.mxu0 0.0
    %82 = vmatpush2.msra.mxu0 0.0
    %83 = vmatprep.subr.mxu0 0.0
    %84 = vmatpush2.msra.mxu0 0.0
    %85 = vmatprep.subr.mxu0 0.0
    %86 = vmatpush2.msra.mxu0 0.0
    %87 = vmatprep.subr.mxu0 0.0
    %88 = vmatpush2.msra.mxu0 0.0
    %89 = vmatprep.subr.mxu0 0.0
    %90 = vmatpush2.msra.mxu0 0.0
    %91 = vmatprep.subr.mxu0 0.0
    %92 = vmatpush2.msra.mxu0 0.0
    %93 = vmatprep.subr.mxu0 0.0
    %94 = vmatpush2.msra.mxu0 0.0
    %95 = vmatprep.subr.mxu0 0.0
    %96 = vmatpush2.msra.mxu0 0.0
    %97 = vmatprep.subr.mxu0 0.0
    %98 = vmatpush2.msra.mxu0 0.0
    %99 = vmatprep.subr.mxu0 0.0
    %100 = vmatpush2.msra.mxu0 0.0
    %101 = vmatprep.subr.mxu0 0.0
    %102 = vmatpush2.msra.mxu0 0.0
    %103 = vmatprep.subr.mxu0 0.0
    %104 = vmatpush2.msra.mxu0 0.0
    %105 = vmatprep.subr.mxu0 0.0
    %106 = vmatpush2.msra.mxu0 0.0
    %107 = vmatprep.mubr.f32.mxu0 0.0
    %108 = vmatmul.mubr.f32.gmra.mxu0 %v41
    %v109 = vpop.f32.mrf.mxu0
    %v110 = vadd.f32 %v37, %v109
    %v111 = vpop.f32.mrf.mxu0
    %112 = vdwg.mxu0
    %v113 = vmax.f32 %v110, 0.0
    %v114 = vld [vmem:[#allocation2] sm:$0xff]
    %v115 = vld [vmem:[%s3] sm:$0xff]
    %v116 = vld [vmem:[%s3 + $0x8] sm:$0xff]
    %v117 = vld [vmem:[%s3 + $0x10] sm:$0xff]
    %v118 = vld [vmem:[%s3 + $0x18] sm:$0xff]
    %v119 = vld [vmem:[%s3 + $0x20] sm:$0xff]
    %v120 = vld [vmem:[%s3 + $0x28] sm:$0xff]
    %v121 = vld [vmem:[%s3 + $0x30] sm:$0xff]
    %v122 = vld [vmem:[%s3 + $0x38] sm:$0xff]
    %vm123 = vcmask 523264
    %v125 = vsel %vm123, %v113, 0
    %127 = vmatprep.subr.mxu0 0.0
    %128 = vmatpush1.msra.mxu0 0.0
    %129 = vmatprep.subr.mxu0 0.0
    %130 = vmatpush1.msra.mxu0 0.0
    %131 = vmatprep.subr.mxu0 0.0
    %132 = vmatpush1.msra.mxu0 0.0
    %133 = vmatprep.subr.mxu0 0.0
    %134 = vmatpush1.msra.mxu0 0.0
    %135 = vmatprep.subr.mxu0 0.0
    %136 = vmatpush1.msra.mxu0 0.0
    %137 = vmatprep.subr.mxu0 0.0
    %138 = vmatpush1.msra.mxu0 0.0
    %139 = vmatprep.subr.mxu0 0.0
    %140 = vmatpush1.msra.mxu0 0.0
    %141 = vmatprep.subr.mxu0 0.0
    %142 = vmatpush1.msra.mxu0 0.0
    %143 = vmatprep.subr.mxu0 0.0
    %144 = vmatpush1.msra.mxu0 %v122
    %145 = vmatprep.subr.mxu0 0.0
    %146 = vmatpush1.msra.mxu0 %v121
    %147 = vmatprep.subr.mxu0 0.0
    %148 = vmatpush1.msra.mxu0 %v120
    %149 = vmatprep.subr.mxu0 0.0
    %150 = vmatpush1.msra.mxu0 %v119
    %151 = vmatprep.subr.mxu0 0.0
    %152 = vmatpush1.msra.mxu0 %v118
    %153 = vmatprep.subr.mxu0 0.0
    %154 = vmatpush1.msra.mxu0 %v117
    %155 = vmatprep.subr.mxu0 0.0
    %156 = vmatpush1.msra.mxu0 %v116
    %157 = vmatprep.subr.mxu0 0.0
    %158 = vmatpush1.msra.mxu0 %v115
    %159 = vmatprep.subr.mxu0 0.0
    %160 = vmatpush2.msra.mxu0 0.0
    %161 = vmatprep.subr.mxu0 0.0
    %162 = vmatpush2.msra.mxu0 0.0
    %163 = vmatprep.subr.mxu0 0.0
    %164 = vmatpush2.msra.mxu0 0.0
    %165 = vmatprep.subr.mxu0 0.0
    %166 = vmatpush2.msra.mxu0 0.0
    %167 = vmatprep.subr.mxu0 0.0
    %168 = vmatpush2.msra.mxu0 0.0
    %169 = vmatprep.subr.mxu0 0.0
    %170 = vmatpush2.msra.mxu0 0.0
    %171 = vmatprep.subr.mxu0 0.0
    %172 = vmatpush2.msra.mxu0 0.0
    %173 = vmatprep.subr.mxu0 0.0
    %174 = vmatpush2.msra.mxu0 0.0
    %175 = vmatprep.subr.mxu0 0.0
    %176 = vmatpush2.msra.mxu0 0.0
    %177 = vmatprep.subr.mxu0 0.0
    %178 = vmatpush2.msra.mxu0 0.0
    %179 = vmatprep.subr.mxu0 0.0
    %180 = vmatpush2.msra.mxu0 0.0
    %181 = vmatprep.subr.mxu0 0.0
    %182 = vmatpush2.msra.mxu0 0.0
    %183 = vmatprep.subr.mxu0 0.0
    %184 = vmatpush2.msra.mxu0 0.0
    %185 = vmatprep.subr.mxu0 0.0
    %186 = vmatpush2.msra.mxu0 0.0
    %187 = vmatprep.subr.mxu0 0.0
    %188 = vmatpush2.msra.mxu0 0.0
    %189 = vmatprep.subr.mxu0 0.0
    %190 = vmatpush2.msra.mxu0 0.0
    %191 = vmatprep.mubr.f32.mxu0 0.0
    %192 = vmatmul.mubr.f32.gmra.mxu0 %v125
    %v193 = vpop.f32.mrf.mxu0
    %v194 = vadd.f32 0.0, %v193
    %v195 = vpop.f32.mrf.mxu0
    %196 = vdwg.mxu0
    %v197 = vadd.f32 %v114, %v194
    %vm198 = vcmask 130048
    %199 = vst.msk [vmem:[#allocation2] sm:$0xff] %vm198, %v197
    // Predicated region
    $region26: #{tpu_custom_call.1} parent=1 // pred_check
      %p200 = pneg %p21
    $region27: #{tpu_custom_call.1} parent=1 // pred_check_branch
      %202 = sbr.rel (%p200) target = $region29
    $region28: #{tpu_custom_call.1} parent=1 // pred_region
      %v203 = vld [vmem:[#allocation2] sm:$0xff]
      %v204 = vld [vmem:[%s4] sm:$0x1]
      %v206 = vlaneseq
      %v207 = vshrl.u32 %v206, 7
      %v208 = vsub.s32 0, %v207
      %v209 = vrot.slane %v204, %v208
      %v211 = vadd.f32 %v203, %v209
      %212 = vst.msk [vmem:[#allocation3] sm:$0xff] %vm198, %v211
    $region29: #{tpu_custom_call.1} parent=1 // pred_fallthru
      _
    // Predicated region
    $region30: #{tpu_custom_call.1} parent=1 // pred_check
      _
    $region31: #{tpu_custom_call.1} parent=1 // pred_check_branch
      %214 = sbr.rel (0) target = $region33
    $region32: #{tpu_custom_call.1} parent=1 // pred_region
      %s216 = ssub.s32 128, 128
      %217 = vsyncadd [#allocation4], %s216
      %s219 = sshll.u32 [#allocation3], 4
      %s220 = int_to_ptr.vmem [resolvable:$true] %s219
      %222 = dma.vmem_to_hbm [thread:$0]  %s220, 128, %s5, [#allocation4]
    $region33: #{tpu_custom_call.1} parent=1 // pred_fallthru
      _
    // Predicated region
    $region34: #{tpu_custom_call.1} parent=1 // pred_check
      _
    $region35: #{tpu_custom_call.1} parent=1 // pred_check_branch
      %224 = sbr.rel (0) target = $region37
    $region36: #{tpu_custom_call.1} parent=1 // pred_region
      %225 = dma.done [#allocation4], 128
    $region37: #{tpu_custom_call.1} parent=1 // pred_fallthru
      _
    %226 = vsyncpa [#allocation4], 1

// kernel: tpu_custom_call.1
$region0: #{tpu_custom_call.1}
  #allocation0 [shape = 'u32[]', space=smem, size = 0x4, offset = 0x4, fixed_abs, tag = 'smem constant byte address 0x4 - core index']
  #allocation1 [shape = 'u32[144,128]{1,0:T(1,128)}', space=vmem, size = 0x12000, scoped, tag = 'internal scratch']
  #allocation2 [shape = 'f32[8,16]{1,0:T(8,128)}', space=vmem, size = 0x1000, scoped, tag = 'scratch operand']
  %s0 = inlined_call_operand.vmem [shape: f32[8,32], index: 0, kind: input, shape index: {}]
  %s1 = inlined_call_operand.vmem [shape: f32[32,64], index: 1, kind: input, shape index: {}]
  %s2 = inlined_call_operand.vmem [shape: f32[1,64], index: 2, kind: input, shape index: {}]
  %s3 = inlined_call_operand.vmem [shape: f32[64,16], index: 3, kind: input, shape index: {}]
  %s4 = inlined_call_operand.vmem [shape: f32[1,16], index: 4, kind: input, shape index: {}]
  %s5 = inlined_call_operand.hbm [shape: f32[8,16], index: 5, kind: output, shape index: {}]
  %s6 = sld [smem:[#allocation0]]
  $region38: #{tpu_custom_call.1} parent=0
    _
  %s8 = ssub.s32 1, %s6
  %s9 = scalar_select 0, %s8, %s6
  $region1: #{tpu_custom_call.1} parent=0
    #allocation3 [shape = 'u8[4096]{0}', space=vmem, size = 0x1000, scoped, tag = 'output window, operand 0, single buffered']
    #allocation4 [shape = 's32[1]{0}', space=sflag, size = 0x4, scoped, tag = 'scoped memory for tpu_custom_call.1']
    %10 = vsyncpa [#allocation4], 0
    // Predicated region
    $region2: #{tpu_custom_call.1} parent=1 // pred_check
      _
    $region3: #{tpu_custom_call.1} parent=1 // pred_check_branch
      %12 = sbr.rel (0) target = $region5
    $region4: #{tpu_custom_call.1} parent=1 // pred_region
      _
    $region5: #{tpu_custom_call.1} parent=1 // pred_fallthru
      _
    // Predicated region
    $region6: #{tpu_custom_call.1} parent=1 // pred_check
      _
    $region7: #{tpu_custom_call.1} parent=1 // pred_check_branch
      %14 = sbr.rel (0) target = $region9
    $region8: #{tpu_custom_call.1} parent=1 // pred_region
      _
    $region9: #{tpu_custom_call.1} parent=1 // pred_fallthru
      _
    // Predicated region
    $region10: #{tpu_custom_call.1} parent=1 // pred_check
      _
    $region11: #{tpu_custom_call.1} parent=1 // pred_check_branch
      %16 = sbr.rel (0) target = $region13
    $region12: #{tpu_custom_call.1} parent=1 // pred_region
      _
    $region13: #{tpu_custom_call.1} parent=1 // pred_fallthru
      _
    // Predicated region
    $region14: #{tpu_custom_call.1} parent=1 // pred_check
      _
    $region15: #{tpu_custom_call.1} parent=1 // pred_check_branch
      %18 = sbr.rel (0) target = $region17
    $region16: #{tpu_custom_call.1} parent=1 // pred_region
      _
    $region17: #{tpu_custom_call.1} parent=1 // pred_fallthru
      _
    // Predicated region
    $region18: #{tpu_custom_call.1} parent=1 // pred_check
      _
    $region19: #{tpu_custom_call.1} parent=1 // pred_check_branch
      %20 = sbr.rel (0) target = $region21
    $region20: #{tpu_custom_call.1} parent=1 // pred_region
      _
    $region21: #{tpu_custom_call.1} parent=1 // pred_fallthru
      _
    %p21 = scmp.eq.s32.totalorder 0, 0
    // Predicated region
    $region22: #{tpu_custom_call.1} parent=1 // pred_check
      %p22 = pneg %p21
    $region23: #{tpu_custom_call.1} parent=1 // pred_check_branch
      %24 = sbr.rel (%p22) target = $region25
    $region24: #{tpu_custom_call.1} parent=1 // pred_region
      %vm25 = vcmask 130048
      %26 = vst.msk [vmem:[#allocation2] sm:$0xff] %vm25, 0.0
    $region25: #{tpu_custom_call.1} parent=1 // pred_fallthru
      _
    %v27 = vld [vmem:[%s0] sm:$0xff]
    %v28 = vld [vmem:[%s1] sm:$0xff]
    %v29 = vld [vmem:[%s1 + $0x8] sm:$0xff]
    %v30 = vld [vmem:[%s1 + $0x10] sm:$0xff]
    %v31 = vld [vmem:[%s1 + $0x18] sm:$0xff]
    %v32 = vld [vmem:[%s2] sm:$0x1]
    %v34 = vlaneseq
    %v35 = vshrl.u32 %v34, 7
    %v36 = vsub.s32 0, %v35
    %v37 = vrot.slane %v32, %v36
    %vm39 = vcmask 261120
    %v41 = vsel %vm39, %v27, 0
    %43 = vmatprep.subr.mxu0 0.0
    %44 = vmatpush1.msra.mxu0 0.0
    %45 = vmatprep.subr.mxu0 0.0
    %46 = vmatpush1.msra.mxu0 0.0
    %47 = vmatprep.subr.mxu0 0.0
    %48 = vmatpush1.msra.mxu0 0.0
    %49 = vmatprep.subr.mxu0 0.0
    %50 = vmatpush1.msra.mxu0 0.0
    %51 = vmatprep.subr.mxu0 0.0
    %52 = vmatpush1.msra.mxu0 0.0
    %53 = vmatprep.subr.mxu0 0.0
    %54 = vmatpush1.msra.mxu0 0.0
    %55 = vmatprep.subr.mxu0 0.0
    %56 = vmatpush1.msra.mxu0 0.0
    %57 = vmatprep.subr.mxu0 0.0
    %58 = vmatpush1.msra.mxu0 0.0
    %59 = vmatprep.subr.mxu0 0.0
    %60 = vmatpush1.msra.mxu0 0.0
    %61 = vmatprep.subr.mxu0 0.0
    %62 = vmatpush1.msra.mxu0 0.0
    %63 = vmatprep.subr.mxu0 0.0
    %64 = vmatpush1.msra.mxu0 0.0
    %65 = vmatprep.subr.mxu0 0.0
    %66 = vmatpush1.msra.mxu0 0.0
    %67 = vmatprep.subr.mxu0 0.0
    %68 = vmatpush1.msra.mxu0 %v31
    %69 = vmatprep.subr.mxu0 0.0
    %70 = vmatpush1.msra.mxu0 %v30
    %71 = vmatprep.subr.mxu0 0.0
    %72 = vmatpush1.msra.mxu0 %v29
    %73 = vmatprep.subr.mxu0 0.0
    %74 = vmatpush1.msra.mxu0 %v28
    %75 = vmatprep.subr.mxu0 0.0
    %76 = vmatpush2.msra.mxu0 0.0
    %77 = vmatprep.subr.mxu0 0.0
    %78 = vmatpush2.msra.mxu0 0.0
    %79 = vmatprep.subr.mxu0 0.0
    %80 = vmatpush2.msra.mxu0 0.0
    %81 = vmatprep.subr.mxu0 0.0
    %82 = vmatpush2.msra.mxu0 0.0
    %83 = vmatprep.subr.mxu0 0.0
    %84 = vmatpush2.msra.mxu0 0.0
    %85 = vmatprep.subr.mxu0 0.0
    %86 = vmatpush2.msra.mxu0 0.0
    %87 = vmatprep.subr.mxu0 0.0
    %88 = vmatpush2.msra.mxu0 0.0
    %89 = vmatprep.subr.mxu0 0.0
    %90 = vmatpush2.msra.mxu0 0.0
    %91 = vmatprep.subr.mxu0 0.0
    %92 = vmatpush2.msra.mxu0 0.0
    %93 = vmatprep.subr.mxu0 0.0
    %94 = vmatpush2.msra.mxu0 0.0
    %95 = vmatprep.subr.mxu0 0.0
    %96 = vmatpush2.msra.mxu0 0.0
    %97 = vmatprep.subr.mxu0 0.0
    %98 = vmatpush2.msra.mxu0 0.0
    %99 = vmatprep.subr.mxu0 0.0
    %100 = vmatpush2.msra.mxu0 0.0
    %101 = vmatprep.subr.mxu0 0.0
    %102 = vmatpush2.msra.mxu0 0.0
    %103 = vmatprep.subr.mxu0 0.0
    %104 = vmatpush2.msra.mxu0 0.0
    %105 = vmatprep.subr.mxu0 0.0
    %106 = vmatpush2.msra.mxu0 0.0
    %107 = vmatprep.mubr.f32.mxu0 0.0
    %108 = vmatmul.mubr.f32.gmra.mxu0 %v41
    %v109 = vpop.f32.mrf.mxu0
    %v110 = vadd.f32 %v37, %v109
    %v111 = vpop.f32.mrf.mxu0
    %112 = vdwg.mxu0
    %v113 = vmax.f32 %v110, 0.0
    %v114 = vld [vmem:[#allocation2] sm:$0xff]
    %v115 = vld [vmem:[%s3] sm:$0xff]
    %v116 = vld [vmem:[%s3 + $0x8] sm:$0xff]
    %v117 = vld [vmem:[%s3 + $0x10] sm:$0xff]
    %v118 = vld [vmem:[%s3 + $0x18] sm:$0xff]
    %v119 = vld [vmem:[%s3 + $0x20] sm:$0xff]
    %v120 = vld [vmem:[%s3 + $0x28] sm:$0xff]
    %v121 = vld [vmem:[%s3 + $0x30] sm:$0xff]
    %v122 = vld [vmem:[%s3 + $0x38] sm:$0xff]
    %vm123 = vcmask 523264
    %v125 = vsel %vm123, %v113, 0
    %127 = vmatprep.subr.mxu0 0.0
    %128 = vmatpush1.msra.mxu0 0.0
    %129 = vmatprep.subr.mxu0 0.0
    %130 = vmatpush1.msra.mxu0 0.0
    %131 = vmatprep.subr.mxu0 0.0
    %132 = vmatpush1.msra.mxu0 0.0
    %133 = vmatprep.subr.mxu0 0.0
    %134 = vmatpush1.msra.mxu0 0.0
    %135 = vmatprep.subr.mxu0 0.0
    %136 = vmatpush1.msra.mxu0 0.0
    %137 = vmatprep.subr.mxu0 0.0
    %138 = vmatpush1.msra.mxu0 0.0
    %139 = vmatprep.subr.mxu0 0.0
    %140 = vmatpush1.msra.mxu0 0.0
    %141 = vmatprep.subr.mxu0 0.0
    %142 = vmatpush1.msra.mxu0 0.0
    %143 = vmatprep.subr.mxu0 0.0
    %144 = vmatpush1.msra.mxu0 %v122
    %145 = vmatprep.subr.mxu0 0.0
    %146 = vmatpush1.msra.mxu0 %v121
    %147 = vmatprep.subr.mxu0 0.0
    %148 = vmatpush1.msra.mxu0 %v120
    %149 = vmatprep.subr.mxu0 0.0
    %150 = vmatpush1.msra.mxu0 %v119
    %151 = vmatprep.subr.mxu0 0.0
    %152 = vmatpush1.msra.mxu0 %v118
    %153 = vmatprep.subr.mxu0 0.0
    %154 = vmatpush1.msra.mxu0 %v117
    %155 = vmatprep.subr.mxu0 0.0
    %156 = vmatpush1.msra.mxu0 %v116
    %157 = vmatprep.subr.mxu0 0.0
    %158 = vmatpush1.msra.mxu0 %v115
    %159 = vmatprep.subr.mxu0 0.0
    %160 = vmatpush2.msra.mxu0 0.0
    %161 = vmatprep.subr.mxu0 0.0
    %162 = vmatpush2.msra.mxu0 0.0
    %163 = vmatprep.subr.mxu0 0.0
    %164 = vmatpush2.msra.mxu0 0.0
    %165 = vmatprep.subr.mxu0 0.0
    %166 = vmatpush2.msra.mxu0 0.0
    %167 = vmatprep.subr.mxu0 0.0
    %168 = vmatpush2.msra.mxu0 0.0
    %169 = vmatprep.subr.mxu0 0.0
    %170 = vmatpush2.msra.mxu0 0.0
    %171 = vmatprep.subr.mxu0 0.0
    %172 = vmatpush2.msra.mxu0 0.0
    %173 = vmatprep.subr.mxu0 0.0
    %174 = vmatpush2.msra.mxu0 0.0
    %175 = vmatprep.subr.mxu0 0.0
    %176 = vmatpush2.msra.mxu0 0.0
    %177 = vmatprep.subr.mxu0 0.0
    %178 = vmatpush2.msra.mxu0 0.0
    %179 = vmatprep.subr.mxu0 0.0
    %180 = vmatpush2.msra.mxu0 0.0
    %181 = vmatprep.subr.mxu0 0.0
    %182 = vmatpush2.msra.mxu0 0.0
    %183 = vmatprep.subr.mxu0 0.0
    %184 = vmatpush2.msra.mxu0 0.0
    %185 = vmatprep.subr.mxu0 0.0
    %186 = vmatpush2.msra.mxu0 0.0
    %187 = vmatprep.subr.mxu0 0.0
    %188 = vmatpush2.msra.mxu0 0.0
    %189 = vmatprep.subr.mxu0 0.0
    %190 = vmatpush2.msra.mxu0 0.0
    %191 = vmatprep.mubr.f32.mxu0 0.0
    %192 = vmatmul.mubr.f32.gmra.mxu0 %v125
    %v193 = vpop.f32.mrf.mxu0
    %v194 = vadd.f32 0.0, %v193
    %v195 = vpop.f32.mrf.mxu0
    %196 = vdwg.mxu0
    %v197 = vadd.f32 %v114, %v194
    %vm198 = vcmask 130048
    %199 = vst.msk [vmem:[#allocation2] sm:$0xff] %vm198, %v197
    // Predicated region
    $region26: #{tpu_custom_call.1} parent=1 // pred_check
      %p200 = pneg %p21
    $region27: #{tpu_custom_call.1} parent=1 // pred_check_branch
      %202 = sbr.rel (%p200) target = $region29
    $region28: #{tpu_custom_call.1} parent=1 // pred_region
      %v203 = vld [vmem:[#allocation2] sm:$0xff]
      %v204 = vld [vmem:[%s4] sm:$0x1]
      %v206 = vlaneseq
      %v207 = vshrl.u32 %v206, 7
      %v208 = vsub.s32 0, %v207
      %v209 = vrot.slane %v204, %v208
      %v211 = vadd.f32 %v203, %v209
      %212 = vst.msk [vmem:[#allocation3] sm:$0xff] %vm198, %v211
    $region29: #{tpu_custom_call.1} parent=1 // pred_fallthru
      _
    // Predicated region
    $region30: #{tpu_custom_call.1} parent=1 // pred_check
      _
    $region31: #{tpu_custom_call.1} parent=1 // pred_check_branch
      %214 = sbr.rel (0) target = $region33
    $region32: #{tpu_custom_call.1} parent=1 // pred_region
      %s216 = ssub.s32 128, 128
      %217 = vsyncadd [#allocation4], %s216
      %s219 = sshll.u32 [#allocation3], 4
      %s220 = int_to_ptr.vmem [resolvable:$true] %s219
      %222 = dma.vmem_to_hbm [thread:$0]  %s220, 128, %s5, [#allocation4]
    $region33: #{tpu_custom_call.1} parent=1 // pred_fallthru
      _
    // Predicated region
    $region34: #{tpu_custom_call.1} parent=1 // pred_check
      _
    $region35: #{tpu_custom_call.1} parent=1 // pred_check_branch
      %224 = sbr.rel (0) target = $region37
    $region36: #{tpu_custom_call.1} parent=1 // pred_region
      %225 = dma.done [#allocation4], 128
    $region37: #{tpu_custom_call.1} parent=1 // pred_fallthru
      _
    %226 = vsyncpa [#allocation4], 1

</llo_original>
